<compile_context>
chip_gen: v7x
topology: tpu7x:2x2x1
jax: 0.10.0
libtpu: 0.0.40
codegen_flags: <defaults>
</compile_context>

<pallas_src>
from functools import partial
from math import sqrt

import jax
import jax.numpy as jnp
from jax import lax
from jax.experimental import pallas as pl
from jax.experimental.pallas import tpu as pltpu


# ----------------------------------------------------------------------------
# helpers
# ----------------------------------------------------------------------------
def _pick_block_l(L, max_block=256):
    """Largest query-length tile <= max_block that divides L (8-aligned if possible)."""
    if L <= max_block:
        return L
    for bl in range(max_block, 7, -1):
        if L % bl == 0 and bl % 8 == 0:
            return bl
    return L


def _vmem_limit_bytes(*, TL, S, d_model, E, Dv, H, in_itemsize, c_itemsize,
                      attn_itemsize, output_attention):
    """Rough VMEM budget (single-buffered weights, double-buffered act blocks)."""
    weights = ((2 * d_model * E + d_model * Dv + Dv * d_model) * H * c_itemsize
               + (2 * E + Dv) * H * 4 + d_model * 4)
    inputs = 2 * (TL + 2 * S) * d_model * in_itemsize
    outputs = 2 * TL * d_model * in_itemsize
    if output_attention:
        outputs += 2 * TL * S * attn_itemsize
    scratch = H * S * (E + Dv) * c_itemsize + TL * d_model * 4
    temps = 6 * TL * S * 4 + 4 * TL * d_model * 4        # scores / softmax temporaries
    total = weights + inputs + outputs + scratch + temps
    return int(min(max(2 * total, 32 * 1024 * 1024), 120 * 1024 * 1024))


# ----------------------------------------------------------------------------
# fused attention-layer kernel: one (batch, L-block, head) tile per grid step
# ----------------------------------------------------------------------------
def _attention_layer_kernel(q_in_ref, k_in_ref, v_in_ref,
                            wq_ref, bq_ref, wk_ref, bk_ref,
                            wv_ref, bv_ref, wo_ref, bo_ref,
                            out_ref, *rest, output_attention):
    if output_attention:
        attn_ref, k_sc, v_sc, out_acc = rest
    else:
        k_sc, v_sc, out_acc = rest

    l = pl.program_id(1)
    h = pl.program_id(2)
    n_h = pl.num_programs(2)
    cdt = wq_ref.dtype                    # bf16 compute dtype (from prepared weights)

    # ---- per-head K/V projection, computed at the first L block of each batch
    #      element and cached head-major in VMEM scratch across L blocks --------
    @pl.when(l == 0)
    def _project_kv():
        x_k = k_in_ref[0].astype(cdt)                                  # (S, d_model)
        x_v = v_in_ref[0].astype(cdt)
        k_sc[h] = (jnp.dot(x_k, wk_ref[h], preferred_element_type=jnp.float32)
                   + bk_ref[h]).astype(cdt)                            # (S, E)
        v_sc[h] = (jnp.dot(x_v, wv_ref[h], preferred_element_type=jnp.float32)
                   + bv_ref[h]).astype(cdt)                            # (S, Dv)

    # ---- per-head Q projection for this L block (1/sqrt(E) pre-folded) -------
    x_q = q_in_ref[0].astype(cdt)                                      # (TL, d_model)
    qh = (jnp.dot(x_q, wq_ref[h], preferred_element_type=jnp.float32)
          + bq_ref[h]).astype(cdt)                                     # (TL, E)

    kh = k_sc[h]                                                       # (S, E)
    vh = v_sc[h]                                                       # (S, Dv)

    # scores: contract on E without materializing K^T (flash-attn style form)
    s = lax.dot_general(qh, kh, (((1,), (1,)), ((), ())),
                        preferred_element_type=jnp.float32)            # (TL, S)
    m = jnp.max(s, axis=-1, keepdims=True)
    p = jnp.exp(s - m)
    denom = jnp.sum(p, axis=-1, keepdims=True)
    if output_attention:
        a = p / denom                       # exact: returned rows sum to ~1 (f32)
        attn_ref[0, 0] = a.astype(attn_ref.dtype)
    else:
        a = p * pl.reciprocal(denom, approx=True)       # EUP slot, essentially free

    ctx = jnp.dot(a.astype(cdt), vh, preferred_element_type=jnp.float32)   # (TL, Dv)

    # ---- out-projection accumulated per head: out = sum_h ctx_h @ Wo_h + bo ---
    @pl.when(h == 0)
    def _init_out():
        out_acc[...] = jnp.zeros_like(out_acc)

    out_acc[...] += jnp.dot(ctx.astype(cdt), wo_ref[h],
                            preferred_element_type=jnp.float32)        # (TL, d_model)

    @pl.when(h == n_h - 1)
    def _write_out():
        out_ref[0] = (out_acc[...] + bo_ref[...]).astype(out_ref.dtype)


# ----------------------------------------------------------------------------
# wrapper: one pallas_call for the whole AttentionLayer forward
# ----------------------------------------------------------------------------
def attention_layer_forward(params, queries, keys, values, attn_mask=None,
                            tau=None, delta=None, *, n_heads,
                            output_attention=True, block_l=None,
                            attn_dtype=jnp.bfloat16):
    if attn_mask is not None:
        # TODO(synk): masking not implemented — fail loudly instead of silently
        #             dropping the mask.
        raise NotImplementedError("attn_mask is not supported by this kernel")
    del tau, delta  # FullAttention ignores them

    B, L, d_model = queries.shape
    _, S, _ = keys.shape
    H, _, E = params["wq"].shape
    Dv = params["wv"].shape[2]
    if H != n_heads:
        raise ValueError("params were prepared for a different n_heads")

    TL = block_l or _pick_block_l(L)
    if L % TL != 0:
        raise ValueError(f"block_l={TL} must divide L={L}")
    n_l = L // TL

    cdt = params["wq"].dtype
    kernel = partial(_attention_layer_kernel, output_attention=output_attention)

    const3 = lambda b, l, h: (0, 0, 0)
    resident = dict(pipeline_mode=pl.Buffered(1))   # constant blocks: single-buffered
    in_specs = [
        pl.BlockSpec((1, TL, d_model), lambda b, l, h: (b, l, 0)),     # queries
        pl.BlockSpec((1, S, d_model), lambda b, l, h: (b, 0, 0)),      # keys
        pl.BlockSpec((1, S, d_model), lambda b, l, h: (b, 0, 0)),      # values
        pl.BlockSpec((H, d_model, E), const3, **resident),             # wq (scaled)
        pl.BlockSpec((H, 1, E), const3, **resident),                   # bq (scaled)
        pl.BlockSpec((H, d_model, E), const3, **resident),             # wk
        pl.BlockSpec((H, 1, E), const3, **resident),                   # bk
        pl.BlockSpec((H, d_model, Dv), const3, **resident),            # wv
        pl.BlockSpec((H, 1, Dv), const3, **resident),                  # bv
        pl.BlockSpec((H, Dv, d_model), const3, **resident),            # wo
        pl.BlockSpec((1, d_model), lambda b, l, h: (0, 0), **resident),  # bo
    ]
    out_spec_o = pl.BlockSpec((1, TL, d_model), lambda b, l, h: (b, l, 0))
    out_shape_o = jax.ShapeDtypeStruct((B, L, d_model), queries.dtype)

    scratch = [
        pltpu.VMEM((H, S, E), cdt),            # cached per-head K
        pltpu.VMEM((H, S, Dv), cdt),           # cached per-head V
        pltpu.VMEM((TL, d_model), jnp.float32),  # out-projection accumulator
    ]

    vmem_limit = _vmem_limit_bytes(
        TL=TL, S=S, d_model=d_model, E=E, Dv=Dv, H=H,
        in_itemsize=queries.dtype.itemsize,
        c_itemsize=jnp.dtype(cdt).itemsize,
        attn_itemsize=jnp.dtype(attn_dtype).itemsize,
        output_attention=output_attention)

    # B is megacore-parallel; L and H stay "arbitrary" because the K/V scratch
    # (filled at l==0) and the out accumulator (reduced over h) live across them.
    cparams = pltpu.CompilerParams(
        dimension_semantics=("parallel", "arbitrary", "arbitrary"),
        vmem_limit_bytes=vmem_limit)

    args = (queries, keys, values,
            params["wq"], params["bq"], params["wk"], params["bk"],
            params["wv"], params["bv"], params["wo"], params["bo"])

    if output_attention:
        out, attn = pl.pallas_call(
            kernel,
            grid=(B, n_l, H),
            in_specs=in_specs,
            out_specs=[out_spec_o,
                       pl.BlockSpec((1, 1, TL, S), lambda b, l, h: (b, h, l, 0))],
            out_shape=[out_shape_o,
                       jax.ShapeDtypeStruct((B, H, L, S), attn_dtype)],
            scratch_shapes=scratch,
            compiler_params=cparams,
        )(*args)
        return out, attn

    out = pl.pallas_call(
        kernel,
        grid=(B, n_l, H),
        in_specs=in_specs,
        out_specs=out_spec_o,
        out_shape=out_shape_o,
        scratch_shapes=scratch,
        compiler_params=cparams,
    )(*args)
    return out, None


# ----------------------------------------------------------------------------
# parameter init (PyTorch nn.Linear default, weights (d_in, d_out), biases (1, d_out))
# and one-off host-side preparation into the kernel layout.
# ----------------------------------------------------------------------------
def init_params(key, d_model, n_heads, d_keys=None, d_values=None):
    d_keys = d_keys or d_model // n_heads
    d_values = d_values or d_model // n_heads
    ks = jax.random.split(key, 8)

    def lin(kw, kb, d_in, d_out):
        bound = 1.0 / sqrt(d_in)
        w = jax.random.uniform(kw, (d_in, d_out), jnp.float32, -bound, bound)
        b = jax.random.uniform(kb, (1, d_out), jnp.float32, -bound, bound)
        return w, b

    wq, bq = lin(ks[0], ks[1], d_model, d_keys * n_heads)
    wk, bk = lin(ks[2], ks[3], d_model, d_keys * n_heads)
    wv, bv = lin(ks[4], ks[5], d_model, d_values * n_heads)
    wo, bo = lin(ks[6], ks[7], d_values * n_heads, d_model)
    return dict(wq=wq, bq=bq, wk=wk, bk=bk, wv=wv, bv=bv, wo=wo, bo=bo)


def prepare_params(params, n_heads, compute_dtype=jnp.bfloat16):
    """Head-major, bf16, scale-folded kernel layout (one-off host transform)."""
    H = n_heads
    d_model, HE = params["wq"].shape
    HDv = params["wv"].shape[1]
    E, Dv = HE // H, HDv // H
    scale = 1.0 / sqrt(E)

    def w_hm(w, d_out):   # (d_model, H*d_out) -> (H, d_model, d_out)
        return jnp.transpose(w.reshape(d_model, H, d_out), (1, 0, 2))

    def b_hm(b, d_out):   # (1, H*d_out) -> (H, 1, d_out)
        return jnp.transpose(b.reshape(1, H, d_out), (1, 0, 2))

    return dict(
        wq=w_hm(params["wq"] * scale, E).astype(compute_dtype),
        bq=b_hm(params["bq"] * scale, E).astype(jnp.float32),
        wk=w_hm(params["wk"], E).astype(compute_dtype),
        bk=b_hm(params["bk"], E).astype(jnp.float32),
        wv=w_hm(params["wv"], Dv).astype(compute_dtype),
        bv=b_hm(params["bv"], Dv).astype(jnp.float32),
        wo=params["wo"].reshape(H, Dv, d_model).astype(compute_dtype),
        bo=params["bo"].astype(jnp.float32),
    )


# ----------------------------------------------------------------------------
# pure-JAX reference (raw PyTorch-layout params, f32)
# ----------------------------------------------------------------------------
def reference_forward(params, q_in, k_in, v_in, n_heads):
    B, L, _ = q_in.shape
    _, S, _ = k_in.shape
    H = n_heads
    q = (q_in @ params["wq"] + params["bq"]).reshape(B, L, H, -1)
    k = (k_in @ params["wk"] + params["bk"]).reshape(B, S, H, -1)
    v = (v_in @ params["wv"] + params["bv"]).reshape(B, S, H, -1)
    E = q.shape[-1]
    scores = jnp.einsum("blhe,bshe->bhls", q, k) / jnp.sqrt(jnp.float32(E))
    a = jax.nn.softmax(scores, axis=-1)
    o = jnp.einsum("bhls,bshd->blhd", a, v).reshape(B, L, -1)
    return o @ params["wo"] + params["bo"], a


if __name__ == "__main__":
    d_model, n_heads = 32, 4

    root = jax.random.PRNGKey(0)
    kp, kdata = jax.random.split(root, 2)
    params = init_params(kp, d_model, n_heads)
    kparams = prepare_params(params, n_heads)

    # tolerances account for bf16 MXU operands and the bf16 attention output
    ATOL = RTOL = 2e-2

    def run_case(B, L, S, block_l, output_attention, case_id):
        kq, kk, kv = jax.random.split(jax.random.fold_in(kdata, case_id), 3)
        q = jax.random.normal(kq, (B, L, d_model), jnp.float32)
        k = jax.random.normal(kk, (B, S, d_model), jnp.float32)
        v = jax.random.normal(kv, (B, S, d_model), jnp.float32)

        fwd = jax.jit(partial(attention_layer_forward, n_heads=n_heads,
                              output_attention=output_attention, block_l=block_l))
        out, attn = fwd(kparams, q, k, v, None)
        jax.block_until_ready(out)

        ref_out, ref_attn = reference_forward(params, q, k, v, n_heads)
        assert out.shape == (B, L, d_model)
        assert jnp.allclose(out.astype(jnp.float32), ref_out, atol=ATOL, rtol=RTOL)
        if output_attention:
            assert attn.shape == (B, n_heads, L, S)
            assert jnp.allclose(attn.astype(jnp.float32), ref_attn,
                                atol=ATOL, rtol=RTOL)
        else:
            assert attn is None

    run_case(B=2, L=8, S=8, block_l=None, output_attention=True, case_id=0)
    run_case(B=2, L=8, S=8, block_l=None, output_attention=False, case_id=1)
    # exercises the L-tiling path (n_l > 1) and the cross-L K/V scratch reuse
    run_case(B=2, L=16, S=8, block_l=8, output_attention=True, case_id=2)

    print("KERNEL_OK")
</pallas_src>

<mosaic_0001>
module attributes {stable_mosaic.version = 11 : i64} {
  func.func @_attention_layer_kernel(%arg0: i32, %arg1: i32, %arg2: i32, %arg3: memref<1x8x32xf32, #tpu.memory_space<vmem>>, %arg4: memref<1x8x32xf32, #tpu.memory_space<vmem>>, %arg5: memref<1x8x32xf32, #tpu.memory_space<vmem>>, %arg6: memref<4x32x8xbf16, #tpu.memory_space<vmem>>, %arg7: memref<4x1x8xf32, #tpu.memory_space<vmem>>, %arg8: memref<4x32x8xbf16, #tpu.memory_space<vmem>>, %arg9: memref<4x1x8xf32, #tpu.memory_space<vmem>>, %arg10: memref<4x32x8xbf16, #tpu.memory_space<vmem>>, %arg11: memref<4x1x8xf32, #tpu.memory_space<vmem>>, %arg12: memref<4x8x32xbf16, #tpu.memory_space<vmem>>, %arg13: memref<1x32xf32, #tpu.memory_space<vmem>>, %arg14: memref<1x8x32xf32, #tpu.memory_space<vmem>>, %arg15: memref<1x1x8x8xbf16, #tpu.memory_space<vmem>>, %arg16: memref<4x8x8xbf16, #tpu.memory_space<vmem>>, %arg17: memref<4x8x8xbf16, #tpu.memory_space<vmem>>, %arg18: memref<8x32xf32, #tpu.memory_space<vmem>>) attributes {dimension_semantics = [#tpu.dimension_semantics<parallel>, #tpu.dimension_semantics<arbitrary>, #tpu.dimension_semantics<arbitrary>], iteration_bounds = array<i64: 2, 1, 4>, scalar_prefetch = 0 : i64, scratch_operands = 3 : i64, tpu.core_type = #tpu.core_type<tc>, window_params = [{transform_indices = @transform_0, window_bounds = array<i64: 1, 8, 32>}, {transform_indices = @transform_1, window_bounds = array<i64: 1, 8, 32>}, {transform_indices = @transform_2, window_bounds = array<i64: 1, 8, 32>}, {pipeline_mode = #tpu.pipeline_mode<synchronous>, transform_indices = @transform_3, window_bounds = array<i64: 4, 32, 8>}, {pipeline_mode = #tpu.pipeline_mode<synchronous>, transform_indices = @transform_4, window_bounds = array<i64: 4, 1, 8>}, {pipeline_mode = #tpu.pipeline_mode<synchronous>, transform_indices = @transform_5, window_bounds = array<i64: 4, 32, 8>}, {pipeline_mode = #tpu.pipeline_mode<synchronous>, transform_indices = @transform_6, window_bounds = array<i64: 4, 1, 8>}, {pipeline_mode = #tpu.pipeline_mode<synchronous>, transform_indices = @transform_7, window_bounds = array<i64: 4, 32, 8>}, {pipeline_mode = #tpu.pipeline_mode<synchronous>, transform_indices = @transform_8, window_bounds = array<i64: 4, 1, 8>}, {pipeline_mode = #tpu.pipeline_mode<synchronous>, transform_indices = @transform_9, window_bounds = array<i64: 4, 8, 32>}, {pipeline_mode = #tpu.pipeline_mode<synchronous>, transform_indices = @transform_10, window_bounds = array<i64: 1, 32>}, {transform_indices = @transform_11, window_bounds = array<i64: 1, 8, 32>}, {transform_indices = @transform_12, window_bounds = array<i64: 1, 1, 8, 8>}]} {
    %c0_i32 = arith.constant 0 : i32
    %0 = arith.cmpi eq, %arg1, %c0_i32 : i32
    %1 = arith.extui %0 : i1 to i32
    %c0_i32_0 = arith.constant 0 : i32
    %2 = arith.cmpi ne, %1, %c0_i32_0 : i32
    scf.if %2 {
      %c0_29 = arith.constant 0 : index
      %c0_30 = arith.constant 0 : index
      %c0_31 = arith.constant 0 : index
      %52 = vector.load %arg4[%c0_29, %c0_30, %c0_31] : memref<1x8x32xf32, #tpu.memory_space<vmem>>, vector<1x8x32xf32>
      %53 = vector.shape_cast %52 : vector<1x8x32xf32> to vector<8x32xf32>
      %54 = arith.truncf %53 : vector<8x32xf32> to vector<8x32xbf16>
      %c0_32 = arith.constant 0 : index
      %c0_33 = arith.constant 0 : index
      %c0_34 = arith.constant 0 : index
      %55 = vector.load %arg5[%c0_32, %c0_33, %c0_34] : memref<1x8x32xf32, #tpu.memory_space<vmem>>, vector<1x8x32xf32>
      %56 = vector.shape_cast %55 : vector<1x8x32xf32> to vector<8x32xf32>
      %57 = arith.truncf %56 : vector<8x32xf32> to vector<8x32xbf16>
      %58 = arith.index_cast %arg2 : i32 to index
      %c0_35 = arith.constant 0 : index
      %c0_36 = arith.constant 0 : index
      %59 = vector.load %arg8[%58, %c0_35, %c0_36] : memref<4x32x8xbf16, #tpu.memory_space<vmem>>, vector<1x32x8xbf16>
      %60 = vector.shape_cast %59 : vector<1x32x8xbf16> to vector<32x8xbf16>
      %cst_37 = arith.constant dense<0.000000e+00> : vector<8x8xf32>
      %61 = tpu.matmul %54, %60, %cst_37 {dimension_numbers = #tpu.dot_dimension_numbers<[1], [0], [0], [1], [0, 0, 1, 1], [], []>} : vector<8x32xbf16>, vector<32x8xbf16>, vector<8x8xf32> -> vector<8x8xf32>
      %62 = arith.index_cast %arg2 : i32 to index
      %c0_38 = arith.constant 0 : index
      %c0_39 = arith.constant 0 : index
      %63 = vector.load %arg9[%62, %c0_38, %c0_39] : memref<4x1x8xf32, #tpu.memory_space<vmem>>, vector<1x1x8xf32>
      %64 = vector.shape_cast %63 : vector<1x1x8xf32> to vector<1x8xf32>
      %65 = vector.broadcast %64 : vector<1x8xf32> to vector<8x8xf32>
      %66 = arith.addf %61, %65 : vector<8x8xf32>
      %67 = arith.truncf %66 : vector<8x8xf32> to vector<8x8xbf16>
      %68 = arith.index_cast %arg2 : i32 to index
      %c0_40 = arith.constant 0 : index
      %c0_41 = arith.constant 0 : index
      %69 = vector.load %arg16[%68, %c0_40, %c0_41] : memref<4x8x8xbf16, #tpu.memory_space<vmem>>, vector<1x8x8xbf16>
      %70 = vector.shape_cast %69 : vector<1x8x8xbf16> to vector<8x8xbf16>
      %71 = vector.shape_cast %67 : vector<8x8xbf16> to vector<1x8x8xbf16>
      tpu.vector_store %arg16[%68, %c0_40, %c0_41], %71 {strides = array<i32>} : memref<4x8x8xbf16, #tpu.memory_space<vmem>>, vector<1x8x8xbf16>,
      %72 = arith.index_cast %arg2 : i32 to index
      %c0_42 = arith.constant 0 : index
      %c0_43 = arith.constant 0 : index
      %73 = vector.load %arg10[%72, %c0_42, %c0_43] : memref<4x32x8xbf16, #tpu.memory_space<vmem>>, vector<1x32x8xbf16>
      %74 = vector.shape_cast %73 : vector<1x32x8xbf16> to vector<32x8xbf16>
      %cst_44 = arith.constant dense<0.000000e+00> : vector<8x8xf32>
      %75 = tpu.matmul %57, %74, %cst_44 {dimension_numbers = #tpu.dot_dimension_numbers<[1], [0], [0], [1], [0, 0, 1, 1], [], []>} : vector<8x32xbf16>, vector<32x8xbf16>, vector<8x8xf32> -> vector<8x8xf32>
      %76 = arith.index_cast %arg2 : i32 to index
      %c0_45 = arith.constant 0 : index
      %c0_46 = arith.constant 0 : index
      %77 = vector.load %arg11[%76, %c0_45, %c0_46] : memref<4x1x8xf32, #tpu.memory_space<vmem>>, vector<1x1x8xf32>
      %78 = vector.shape_cast %77 : vector<1x1x8xf32> to vector<1x8xf32>
      %79 = vector.broadcast %78 : vector<1x8xf32> to vector<8x8xf32>
      %80 = arith.addf %75, %79 : vector<8x8xf32>
      %81 = arith.truncf %80 : vector<8x8xf32> to vector<8x8xbf16>
      %82 = arith.index_cast %arg2 : i32 to index
      %c0_47 = arith.constant 0 : index
      %c0_48 = arith.constant 0 : index
      %83 = vector.load %arg17[%82, %c0_47, %c0_48] : memref<4x8x8xbf16, #tpu.memory_space<vmem>>, vector<1x8x8xbf16>
      %84 = vector.shape_cast %83 : vector<1x8x8xbf16> to vector<8x8xbf16>
      %85 = vector.shape_cast %81 : vector<8x8xbf16> to vector<1x8x8xbf16>
      tpu.vector_store %arg17[%82, %c0_47, %c0_48], %85 {strides = array<i32>} : memref<4x8x8xbf16, #tpu.memory_space<vmem>>, vector<1x8x8xbf16>,
    } else {
    }
    %c0 = arith.constant 0 : index
    %c0_1 = arith.constant 0 : index
    %c0_2 = arith.constant 0 : index
    %3 = vector.load %arg3[%c0, %c0_1, %c0_2] : memref<1x8x32xf32, #tpu.memory_space<vmem>>, vector<1x8x32xf32>
    %4 = vector.shape_cast %3 : vector<1x8x32xf32> to vector<8x32xf32>
    %5 = arith.truncf %4 : vector<8x32xf32> to vector<8x32xbf16>
    %6 = arith.index_cast %arg2 : i32 to index
    %c0_3 = arith.constant 0 : index
    %c0_4 = arith.constant 0 : index
    %7 = vector.load %arg6[%6, %c0_3, %c0_4] : memref<4x32x8xbf16, #tpu.memory_space<vmem>>, vector<1x32x8xbf16>
    %8 = vector.shape_cast %7 : vector<1x32x8xbf16> to vector<32x8xbf16>
    %cst = arith.constant dense<0.000000e+00> : vector<8x8xf32>
    %9 = tpu.matmul %5, %8, %cst {dimension_numbers = #tpu.dot_dimension_numbers<[1], [0], [0], [1], [0, 0, 1, 1], [], []>} : vector<8x32xbf16>, vector<32x8xbf16>, vector<8x8xf32> -> vector<8x8xf32>
    %10 = arith.index_cast %arg2 : i32 to index
    %c0_5 = arith.constant 0 : index
    %c0_6 = arith.constant 0 : index
    %11 = vector.load %arg7[%10, %c0_5, %c0_6] : memref<4x1x8xf32, #tpu.memory_space<vmem>>, vector<1x1x8xf32>
    %12 = vector.shape_cast %11 : vector<1x1x8xf32> to vector<1x8xf32>
    %13 = vector.broadcast %12 : vector<1x8xf32> to vector<8x8xf32>
    %14 = arith.addf %9, %13 : vector<8x8xf32>
    %15 = arith.truncf %14 : vector<8x8xf32> to vector<8x8xbf16>
    %16 = arith.index_cast %arg2 : i32 to index
    %c0_7 = arith.constant 0 : index
    %c0_8 = arith.constant 0 : index
    %17 = vector.load %arg16[%16, %c0_7, %c0_8] : memref<4x8x8xbf16, #tpu.memory_space<vmem>>, vector<1x8x8xbf16>
    %18 = vector.shape_cast %17 : vector<1x8x8xbf16> to vector<8x8xbf16>
    %19 = arith.index_cast %arg2 : i32 to index
    %c0_9 = arith.constant 0 : index
    %c0_10 = arith.constant 0 : index
    %20 = vector.load %arg17[%19, %c0_9, %c0_10] : memref<4x8x8xbf16, #tpu.memory_space<vmem>>, vector<1x8x8xbf16>
    %21 = vector.shape_cast %20 : vector<1x8x8xbf16> to vector<8x8xbf16>
    %cst_11 = arith.constant dense<0.000000e+00> : vector<8x8xf32>
    %22 = tpu.matmul %15, %18, %cst_11 {dimension_numbers = #tpu.dot_dimension_numbers<[1], [1], [0], [0], [0, 0, 1, 0], [], []>} : vector<8x8xbf16>, vector<8x8xbf16>, vector<8x8xf32> -> vector<8x8xf32>
    %cst_12 = arith.constant dense<0xFF800000> : vector<8xf32>
    %23 = vector.multi_reduction <maximumf>, %22, %cst_12 [1] : vector<8x8xf32> to vector<8xf32>
    %24 = vector.shape_cast %23 : vector<8xf32> to vector<8x1xf32>
    %25 = vector.broadcast %24 : vector<8x1xf32> to vector<8x8xf32>
    %26 = arith.subf %22, %25 : vector<8x8xf32>
    %27 = math.exp %26 : vector<8x8xf32>
    %cst_13 = arith.constant dense<0.000000e+00> : vector<8xf32>
    %28 = vector.multi_reduction <add>, %27, %cst_13 [1] : vector<8x8xf32> to vector<8xf32>
    %29 = vector.shape_cast %28 : vector<8xf32> to vector<8x1xf32>
    %30 = vector.broadcast %29 : vector<8x1xf32> to vector<8x8xf32>
    %31 = arith.divf %27, %30 : vector<8x8xf32>
    %32 = arith.truncf %31 : vector<8x8xf32> to vector<8x8xbf16>
    %c0_14 = arith.constant 0 : index
    %c0_15 = arith.constant 0 : index
    %c0_16 = arith.constant 0 : index
    %c0_17 = arith.constant 0 : index
    %33 = vector.load %arg15[%c0_14, %c0_15, %c0_16, %c0_17] : memref<1x1x8x8xbf16, #tpu.memory_space<vmem>>, vector<1x1x8x8xbf16>
    %34 = vector.shape_cast %33 : vector<1x1x8x8xbf16> to vector<8x8xbf16>
    %35 = vector.shape_cast %32 : vector<8x8xbf16> to vector<1x1x8x8xbf16>
    tpu.vector_store %arg15[%c0_14, %c0_15, %c0_16, %c0_17], %35 {strides = array<i32>} : memref<1x1x8x8xbf16, #tpu.memory_space<vmem>>, vector<1x1x8x8xbf16>,
    %36 = arith.truncf %31 : vector<8x8xf32> to vector<8x8xbf16>
    %cst_18 = arith.constant dense<0.000000e+00> : vector<8x8xf32>
    %37 = tpu.matmul %36, %21, %cst_18 {dimension_numbers = #tpu.dot_dimension_numbers<[1], [0], [0], [1], [0, 0, 1, 1], [], []>} : vector<8x8xbf16>, vector<8x8xbf16>, vector<8x8xf32> -> vector<8x8xf32>
    %c0_i32_19 = arith.constant 0 : i32
    %38 = arith.cmpi eq, %arg2, %c0_i32_19 : i32
    %39 = arith.extui %38 : i1 to i32
    %c0_i32_20 = arith.constant 0 : i32
    %40 = arith.cmpi ne, %39, %c0_i32_20 : i32
    scf.if %40 {
      %cst_29 = arith.constant 0.000000e+00 : f32
      %52 = vector.broadcast %cst_29 : f32 to vector<8x32xf32>
      %c0_30 = arith.constant 0 : index
      %c0_31 = arith.constant 0 : index
      %53 = vector.load %arg18[%c0_30, %c0_31] : memref<8x32xf32, #tpu.memory_space<vmem>>, vector<8x32xf32>
      tpu.vector_store %arg18[%c0_30, %c0_31], %52 {strides = array<i32>} : memref<8x32xf32, #tpu.memory_space<vmem>>, vector<8x32xf32>,
    } else {
    }
    %c0_21 = arith.constant 0 : index
    %c0_22 = arith.constant 0 : index
    %41 = vector.load %arg18[%c0_21, %c0_22] : memref<8x32xf32, #tpu.memory_space<vmem>>, vector<8x32xf32>
    %42 = arith.truncf %37 : vector<8x8xf32> to vector<8x8xbf16>
    %43 = arith.index_cast %arg2 : i32 to index
    %c0_23 = arith.constant 0 : index
    %c0_24 = arith.constant 0 : index
    %44 = vector.load %arg12[%43, %c0_23, %c0_24] : memref<4x8x32xbf16, #tpu.memory_space<vmem>>, vector<1x8x32xbf16>
    %45 = vector.shape_cast %44 : vector<1x8x32xbf16> to vector<8x32xbf16>
    %cst_25 = arith.constant dense<0.000000e+00> : vector<8x32xf32>
    %46 = tpu.matmul %42, %45, %cst_25 {dimension_numbers = #tpu.dot_dimension_numbers<[1], [0], [0], [1], [0, 0, 1, 1], [], []>} : vector<8x8xbf16>, vector<8x32xbf16>, vector<8x32xf32> -> vector<8x32xf32>
    %47 = arith.addf %41, %46 : vector<8x32xf32>
    %c0_26 = arith.constant 0 : index
    %c0_27 = arith.constant 0 : index
    %48 = vector.load %arg18[%c0_26, %c0_27] : memref<8x32xf32, #tpu.memory_space<vmem>>, vector<8x32xf32>
    tpu.vector_store %arg18[%c0_26, %c0_27], %47 {strides = array<i32>} : memref<8x32xf32, #tpu.memory_space<vmem>>, vector<8x32xf32>,
    %c3_i32 = arith.constant 3 : i32
    %49 = arith.cmpi eq, %arg2, %c3_i32 : i32
    %50 = arith.extui %49 : i1 to i32
    %c0_i32_28 = arith.constant 0 : i32
    %51 = arith.cmpi ne, %50, %c0_i32_28 : i32
    scf.if %51 {
      %c0_29 = arith.constant 0 : index
      %c0_30 = arith.constant 0 : index
      %52 = vector.load %arg18[%c0_29, %c0_30] : memref<8x32xf32, #tpu.memory_space<vmem>>, vector<8x32xf32>
      %c0_31 = arith.constant 0 : index
      %c0_32 = arith.constant 0 : index
      %53 = vector.load %arg13[%c0_31, %c0_32] : memref<1x32xf32, #tpu.memory_space<vmem>>, vector<1x32xf32>
      %54 = vector.broadcast %53 : vector<1x32xf32> to vector<8x32xf32>
      %55 = arith.addf %52, %54 : vector<8x32xf32>
      %c0_33 = arith.constant 0 : index
      %c0_34 = arith.constant 0 : index
      %c0_35 = arith.constant 0 : index
      %56 = vector.load %arg14[%c0_33, %c0_34, %c0_35] : memref<1x8x32xf32, #tpu.memory_space<vmem>>, vector<1x8x32xf32>
      %57 = vector.shape_cast %56 : vector<1x8x32xf32> to vector<8x32xf32>
      %58 = vector.shape_cast %55 : vector<8x32xf32> to vector<1x8x32xf32>
      tpu.vector_store %arg14[%c0_33, %c0_34, %c0_35], %58 {strides = array<i32>} : memref<1x8x32xf32, #tpu.memory_space<vmem>>, vector<1x8x32xf32>,
    } else {
    }
    return
  }
  func.func @transform_0(%arg0: i32, %arg1: i32, %arg2: i32) -> (i32, i32, i32) {
    %c0_i32 = arith.constant 0 : i32
    %c0_i32_0 = arith.constant 0 : i32
    return %arg0, %arg1, %c0_i32 : i32, i32, i32
  }
  func.func @transform_1(%arg0: i32, %arg1: i32, %arg2: i32) -> (i32, i32, i32) {
    %c0_i32 = arith.constant 0 : i32
    %c0_i32_0 = arith.constant 0 : i32
    %c0_i32_1 = arith.constant 0 : i32
    return %arg0, %c0_i32, %c0_i32_0 : i32, i32, i32
  }
  func.func @transform_2(%arg0: i32, %arg1: i32, %arg2: i32) -> (i32, i32, i32) {
    %c0_i32 = arith.constant 0 : i32
    %c0_i32_0 = arith.constant 0 : i32
    %c0_i32_1 = arith.constant 0 : i32
    return %arg0, %c0_i32, %c0_i32_0 : i32, i32, i32
  }
  func.func @transform_3(%arg0: i32, %arg1: i32, %arg2: i32) -> (i32, i32, i32) {
    %c0_i32 = arith.constant 0 : i32
    %c0_i32_0 = arith.constant 0 : i32
    %c0_i32_1 = arith.constant 0 : i32
    %c0_i32_2 = arith.constant 0 : i32
    return %c0_i32, %c0_i32_0, %c0_i32_1 : i32, i32, i32
  }
  func.func @transform_4(%arg0: i32, %arg1: i32, %arg2: i32) -> (i32, i32, i32) {
    %c0_i32 = arith.constant 0 : i32
    %c0_i32_0 = arith.constant 0 : i32
    %c0_i32_1 = arith.constant 0 : i32
    %c0_i32_2 = arith.constant 0 : i32
    return %c0_i32, %c0_i32_0, %c0_i32_1 : i32, i32, i32
  }
  func.func @transform_5(%arg0: i32, %arg1: i32, %arg2: i32) -> (i32, i32, i32) {
    %c0_i32 = arith.constant 0 : i32
    %c0_i32_0 = arith.constant 0 : i32
    %c0_i32_1 = arith.constant 0 : i32
    %c0_i32_2 = arith.constant 0 : i32
    return %c0_i32, %c0_i32_0, %c0_i32_1 : i32, i32, i32
  }
  func.func @transform_6(%arg0: i32, %arg1: i32, %arg2: i32) -> (i32, i32, i32) {
    %c0_i32 = arith.constant 0 : i32
    %c0_i32_0 = arith.constant 0 : i32
    %c0_i32_1 = arith.constant 0 : i32
    %c0_i32_2 = arith.constant 0 : i32
    return %c0_i32, %c0_i32_0, %c0_i32_1 : i32, i32, i32
  }
  func.func @transform_7(%arg0: i32, %arg1: i32, %arg2: i32) -> (i32, i32, i32) {
    %c0_i32 = arith.constant 0 : i32
    %c0_i32_0 = arith.constant 0 : i32
    %c0_i32_1 = arith.constant 0 : i32
    %c0_i32_2 = arith.constant 0 : i32
    return %c0_i32, %c0_i32_0, %c0_i32_1 : i32, i32, i32
  }
  func.func @transform_8(%arg0: i32, %arg1: i32, %arg2: i32) -> (i32, i32, i32) {
    %c0_i32 = arith.constant 0 : i32
    %c0_i32_0 = arith.constant 0 : i32
    %c0_i32_1 = arith.constant 0 : i32
    %c0_i32_2 = arith.constant 0 : i32
    return %c0_i32, %c0_i32_0, %c0_i32_1 : i32, i32, i32
  }
  func.func @transform_9(%arg0: i32, %arg1: i32, %arg2: i32) -> (i32, i32, i32) {
    %c0_i32 = arith.constant 0 : i32
    %c0_i32_0 = arith.constant 0 : i32
    %c0_i32_1 = arith.constant 0 : i32
    %c0_i32_2 = arith.constant 0 : i32
    return %c0_i32, %c0_i32_0, %c0_i32_1 : i32, i32, i32
  }
  func.func @transform_10(%arg0: i32, %arg1: i32, %arg2: i32) -> (i32, i32) {
    %c0_i32 = arith.constant 0 : i32
    %c0_i32_0 = arith.constant 0 : i32
    %c0_i32_1 = arith.constant 0 : i32
    return %c0_i32, %c0_i32_0 : i32, i32
  }
  func.func @transform_11(%arg0: i32, %arg1: i32, %arg2: i32) -> (i32, i32, i32) {
    %c0_i32 = arith.constant 0 : i32
    %c0_i32_0 = arith.constant 0 : i32
    return %arg0, %arg1, %c0_i32 : i32, i32, i32
  }
  func.func @transform_12(%arg0: i32, %arg1: i32, %arg2: i32) -> (i32, i32, i32, i32) {
    %c0_i32 = arith.constant 0 : i32
    %c0_i32_0 = arith.constant 0 : i32
    return %arg0, %arg2, %arg1, %c0_i32 : i32, i32, i32, i32
  }
}

</mosaic_0001>

<llo_original>
// kernel: attention_layer_forward.1
$region0: #{attention_layer_forward.1}
  #allocation0 [shape = 'u32[]', space=smem, size = 0x4, offset = 0x4, fixed_abs, tag = 'smem constant byte address 0x4 - core index']
  #allocation1 [shape = 'u32[144,128]{1,0:T(1,128)}', space=vmem, size = 0x12000, scoped, tag = 'internal scratch']
  #allocation2 [shape = 'bf16[4,8,8]{2,1,0:T(8,128)(2,1)}', space=vmem, size = 0x2000, scoped, tag = 'scratch operand']
  #allocation3 [shape = 'bf16[4,8,8]{2,1,0:T(8,128)(2,1)}', space=vmem, size = 0x2000, scoped, tag = 'scratch operand']
  #allocation4 [shape = 'f32[8,32]{1,0:T(8,128)}', space=vmem, size = 0x1000, scoped, tag = 'scratch operand']
  %s0 = inlined_call_operand.vmem [shape: f32[2,8,32], index: 0, kind: input, shape index: {}]
  %s1 = inlined_call_operand.vmem [shape: f32[2,8,32], index: 1, kind: input, shape index: {}]
  %s2 = inlined_call_operand.vmem [shape: f32[2,8,32], index: 2, kind: input, shape index: {}]
  %s3 = inlined_call_operand.vmem [shape: bf16[4,32,8], index: 3, kind: input, shape index: {}]
  %s4 = inlined_call_operand.vmem [shape: f32[4,1,8], index: 4, kind: input, shape index: {}]
  %s5 = inlined_call_operand.vmem [shape: bf16[4,32,8], index: 5, kind: input, shape index: {}]
  %s6 = inlined_call_operand.vmem [shape: f32[4,1,8], index: 6, kind: input, shape index: {}]
  %s7 = inlined_call_operand.vmem [shape: bf16[4,32,8], index: 7, kind: input, shape index: {}]
  %s8 = inlined_call_operand.vmem [shape: f32[4,1,8], index: 8, kind: input, shape index: {}]
  %s9 = inlined_call_operand.vmem [shape: bf16[4,8,32], index: 9, kind: input, shape index: {}]
  %s10 = inlined_call_operand.vmem [shape: f32[1,32], index: 10, kind: input, shape index: {}]
  %s11 = inlined_call_operand.hbm [shape: f32[2,8,32], index: 11, kind: output, shape index: {0}]
  %s12 = inlined_call_operand.hbm [shape: bf16[2,4,8,8], index: 12, kind: output, shape index: {1}]
  %13 = xla_tuple %s11, %s12
  %s14 = sld [smem:[#allocation0]]
  $region97: #{attention_layer_forward.1} parent=0
    _
  %s16 = ssub.s32 1, %s14
  %s17 = scalar_select 0, %s16, %s14
  $region1: #{attention_layer_forward.1} parent=0
    #allocation5 [shape = 'u8[8192]{0}', space=vmem, size = 0x2000, scoped, tag = 'output window, operand 0']
    #allocation6 [shape = 's32[2]{0}', space=sflag, size = 0x8, scoped, tag = 'scoped memory for attention_layer_forward.1']
    #allocation7 [shape = 'u8[4096]{0}', space=vmem, size = 0x1000, scoped, tag = 'output window, operand 1']
    #allocation8 [shape = 's32[2]{0}', space=sflag, size = 0x8, scoped, tag = 'scoped memory for attention_layer_forward.1']
    %18 = vsyncpa [#allocation6], 0
    %s19 = scalar_lea.sflag [#allocation6], 1
    %20 = vsyncpa %s19, 0
    %21 = vsyncpa [#allocation8], 0
    %s22 = scalar_lea.sflag [#allocation8], 1
    %23 = vsyncpa %s22, 0
    loop: start=0, step=1, limit=10
    $region2: #{attention_layer_forward.1} parent=1 // loop_pre_header
      _
    $region3: #{attention_layer_forward.1} parent=1 // loop_header
      %s25 = sphi 0, %s29
      %p26 = scmp.ge.s32.totalorder %s25, 10
      %s32 = sphi 0, %s51
      %s33 = sphi 0, %s47
      %s34 = sphi 0, %s43
      %s35 = sphi 0, %s32
      %s36 = sphi 0, %s33
      %s37 = sphi 0, %s34
      %s38 = sphi 0, %s35
      %s39 = sphi 0, %s36
      %s40 = sphi 0, %s37
      %s56 = sphi 0, %s58
      %s59 = sphi 0, %s56
      %s60 = sphi 0, %s59
      %s76 = sphi 0, %s60
      %s82 = sphi 0, %s84
      %s85 = sphi 0, %s82
      %s86 = sphi 0, %s85
      %s102 = sphi 0, %s86
      %s108 = sphi 0, %s110
      %s111 = sphi 0, %s108
      %s112 = sphi 0, %s111
      %s128 = sphi 0, %s112
      %s132 = sphi 0, %s132
      %s134 = sphi 0, %s132
      %s135 = sphi 0, %s134
      %s149 = sphi 0, %s135
      %s153 = sphi 0, %s153
      %s155 = sphi 0, %s153
      %s156 = sphi 0, %s155
      %s170 = sphi 0, %s156
      %s174 = sphi 0, %s174
      %s176 = sphi 0, %s174
      %s177 = sphi 0, %s176
      %s191 = sphi 0, %s177
      %s195 = sphi 0, %s195
      %s197 = sphi 0, %s195
      %s198 = sphi 0, %s197
      %s212 = sphi 0, %s198
      %s216 = sphi 0, %s216
      %s218 = sphi 0, %s216
      %s219 = sphi 0, %s218
      %s233 = sphi 0, %s219
      %s237 = sphi 0, %s237
      %s239 = sphi 0, %s237
      %s240 = sphi 0, %s239
      %s254 = sphi 0, %s240
      %s258 = sphi 0, %s258
      %s260 = sphi 0, %s258
      %s261 = sphi 0, %s260
      %s275 = sphi 0, %s261
      %s279 = sphi 0, %s279
      %s281 = sphi 0, %s279
      %s282 = sphi 0, %s281
      %s296 = sphi 0, %s282
      %s304 = sphi 0, %s306
      %s307 = sphi 0, %s304
      %s308 = sphi 0, %s307
      %s324 = sphi 0, %s308
      %s334 = sphi 0, %s336
      %s337 = sphi 0, %s334
      %s338 = sphi 0, %s337
      %s354 = sphi 0, %s338
    $region4: #{attention_layer_forward.1} parent=1 // loop_header_branch
      %28 = sbr.rel (%p26) target = $region8
    $region5: #{attention_layer_forward.1} parent=1 // loop_body
      %s30 = ssub.s32 %s25, 1
      %s31 = ssub.s32 %s25, 2
      %s41 = sadd.s32 1, %s34
      %p42 = scmp.ge.s32.totalorder %s41, 4
      %s43 = scalar_select %p42, 0, %s41
      %s44 = sadd.s32 1, %s33
      %s45 = scalar_select %p42, %s44, %s33
      %p46 = scmp.ge.s32.totalorder %s45, 1
      %s47 = scalar_select %p46, 0, %s45
      %s48 = sadd.s32 1, %s32
      %s49 = scalar_select %p46, %s48, %s32
      %p50 = scmp.ge.s32.totalorder %s49, 2
      %s51 = scalar_select %p50, 0, %s49
      %s52 = ssub.s32 %s32, %s51
      %s53 = ssub.s32 %s33, %s47
      %s54 = sor.u32 %s52, %s53
      %p55 = scmp.eq.s32.totalorder %s54, 0
      %s57 = sadd.s32 %s56, 1
      %s58 = scalar_select %p55, %s56, %s57
      %p61 = pneg %p55
      %p62 = scmp.eq.s32.totalorder %s25, 7
      %p63 = por %p61, %p62
      %p64 = scmp.ne.s32.totalorder %s56, %s59
      %p65 = scmp.eq.s32.totalorder %s25, 0
      %p66 = por %p64, %p65
      %p67 = scmp.ne.s32.totalorder %s56, %s59
      %p68 = scmp.eq.s32.totalorder %s30, 7
      %p69 = por %p67, %p68
      %p70 = scmp.ne.s32.totalorder %s59, %s60
      %p71 = scmp.eq.s32.totalorder %s30, 0
      %p72 = por %p70, %p71
      %p73 = scmp.ne.s32.totalorder %s59, %s60
      %p74 = scmp.eq.s32.totalorder %s31, 7
      %p75 = por %p73, %p74
      %p77 = scmp.ne.s32.totalorder %s60, %s76
      %p78 = scmp.eq.s32.totalorder %s31, 0
      %p79 = por %p77, %p78
      %s80 = ssub.s32 %s32, %s51
      %p81 = scmp.eq.s32.totalorder %s80, 0
      %s83 = sadd.s32 %s82, 1
      %s84 = scalar_select %p81, %s82, %s83
      %p87 = pneg %p81
      %p88 = scmp.eq.s32.totalorder %s25, 7
      %p89 = por %p87, %p88
      %p90 = scmp.ne.s32.totalorder %s82, %s85
      %p91 = scmp.eq.s32.totalorder %s25, 0
      %p92 = por %p90, %p91
      %p93 = scmp.ne.s32.totalorder %s82, %s85
      %p94 = scmp.eq.s32.totalorder %s30, 7
      %p95 = por %p93, %p94
      %p96 = scmp.ne.s32.totalorder %s85, %s86
      %p97 = scmp.eq.s32.totalorder %s30, 0
      %p98 = por %p96, %p97
      %p99 = scmp.ne.s32.totalorder %s85, %s86
      %p100 = scmp.eq.s32.totalorder %s31, 7
      %p101 = por %p99, %p100
      %p103 = scmp.ne.s32.totalorder %s86, %s102
      %p104 = scmp.eq.s32.totalorder %s31, 0
      %p105 = por %p103, %p104
      %s106 = ssub.s32 %s32, %s51
      %p107 = scmp.eq.s32.totalorder %s106, 0
      %s109 = sadd.s32 %s108, 1
      %s110 = scalar_select %p107, %s108, %s109
      %p113 = pneg %p107
      %p114 = scmp.eq.s32.totalorder %s25, 7
      %p115 = por %p113, %p114
      %p116 = scmp.ne.s32.totalorder %s108, %s111
      %p117 = scmp.eq.s32.totalorder %s25, 0
      %p118 = por %p116, %p117
      %p119 = scmp.ne.s32.totalorder %s108, %s111
      %p120 = scmp.eq.s32.totalorder %s30, 7
      %p121 = por %p119, %p120
      %p122 = scmp.ne.s32.totalorder %s111, %s112
      %p123 = scmp.eq.s32.totalorder %s30, 0
      %p124 = por %p122, %p123
      %p125 = scmp.ne.s32.totalorder %s111, %s112
      %p126 = scmp.eq.s32.totalorder %s31, 7
      %p127 = por %p125, %p126
      %p129 = scmp.ne.s32.totalorder %s112, %s128
      %p130 = scmp.eq.s32.totalorder %s31, 0
      %p131 = por %p129, %p130
      %s133 = sadd.s32 %s132, 1
      %p136 = scmp.eq.s32.totalorder %s25, 7
      %p137 = scmp.ne.s32.totalorder %s132, %s134
      %p138 = scmp.eq.s32.totalorder %s25, 0
      %p139 = por %p137, %p138
      %p140 = scmp.ne.s32.totalorder %s132, %s134
      %p141 = scmp.eq.s32.totalorder %s30, 7
      %p142 = por %p140, %p141
      %p143 = scmp.ne.s32.totalorder %s134, %s135
      %p144 = scmp.eq.s32.totalorder %s30, 0
      %p145 = por %p143, %p144
      %p146 = scmp.ne.s32.totalorder %s134, %s135
      %p147 = scmp.eq.s32.totalorder %s31, 7
      %p148 = por %p146, %p147
      %p150 = scmp.ne.s32.totalorder %s135, %s149
      %p151 = scmp.eq.s32.totalorder %s31, 0
      %p152 = por %p150, %p151
      %s154 = sadd.s32 %s153, 1
      %p157 = scmp.eq.s32.totalorder %s25, 7
      %p158 = scmp.ne.s32.totalorder %s153, %s155
      %p159 = scmp.eq.s32.totalorder %s25, 0
      %p160 = por %p158, %p159
      %p161 = scmp.ne.s32.totalorder %s153, %s155
      %p162 = scmp.eq.s32.totalorder %s30, 7
      %p163 = por %p161, %p162
      %p164 = scmp.ne.s32.totalorder %s155, %s156
      %p165 = scmp.eq.s32.totalorder %s30, 0
      %p166 = por %p164, %p165
      %p167 = scmp.ne.s32.totalorder %s155, %s156
      %p168 = scmp.eq.s32.totalorder %s31, 7
      %p169 = por %p167, %p168
      %p171 = scmp.ne.s32.totalorder %s156, %s170
      %p172 = scmp.eq.s32.totalorder %s31, 0
      %p173 = por %p171, %p172
      %s175 = sadd.s32 %s174, 1
      %p178 = scmp.eq.s32.totalorder %s25, 7
      %p179 = scmp.ne.s32.totalorder %s174, %s176
      %p180 = scmp.eq.s32.totalorder %s25, 0
      %p181 = por %p179, %p180
      %p182 = scmp.ne.s32.totalorder %s174, %s176
      %p183 = scmp.eq.s32.totalorder %s30, 7
      %p184 = por %p182, %p183
      %p185 = scmp.ne.s32.totalorder %s176, %s177
      %p186 = scmp.eq.s32.totalorder %s30, 0
      %p187 = por %p185, %p186
      %p188 = scmp.ne.s32.totalorder %s176, %s177
      %p189 = scmp.eq.s32.totalorder %s31, 7
      %p190 = por %p188, %p189
      %p192 = scmp.ne.s32.totalorder %s177, %s191
      %p193 = scmp.eq.s32.totalorder %s31, 0
      %p194 = por %p192, %p193
      %s196 = sadd.s32 %s195, 1
      %p199 = scmp.eq.s32.totalorder %s25, 7
      %p200 = scmp.ne.s32.totalorder %s195, %s197
      %p201 = scmp.eq.s32.totalorder %s25, 0
      %p202 = por %p200, %p201
      %p203 = scmp.ne.s32.totalorder %s195, %s197
      %p204 = scmp.eq.s32.totalorder %s30, 7
      %p205 = por %p203, %p204
      %p206 = scmp.ne.s32.totalorder %s197, %s198
      %p207 = scmp.eq.s32.totalorder %s30, 0
      %p208 = por %p206, %p207
      %p209 = scmp.ne.s32.totalorder %s197, %s198
      %p210 = scmp.eq.s32.totalorder %s31, 7
      %p211 = por %p209, %p210
      %p213 = scmp.ne.s32.totalorder %s198, %s212
      %p214 = scmp.eq.s32.totalorder %s31, 0
      %p215 = por %p213, %p214
      %s217 = sadd.s32 %s216, 1
      %p220 = scmp.eq.s32.totalorder %s25, 7
      %p221 = scmp.ne.s32.totalorder %s216, %s218
      %p222 = scmp.eq.s32.totalorder %s25, 0
      %p223 = por %p221, %p222
      %p224 = scmp.ne.s32.totalorder %s216, %s218
      %p225 = scmp.eq.s32.totalorder %s30, 7
      %p226 = por %p224, %p225
      %p227 = scmp.ne.s32.totalorder %s218, %s219
      %p228 = scmp.eq.s32.totalorder %s30, 0
      %p229 = por %p227, %p228
      %p230 = scmp.ne.s32.totalorder %s218, %s219
      %p231 = scmp.eq.s32.totalorder %s31, 7
      %p232 = por %p230, %p231
      %p234 = scmp.ne.s32.totalorder %s219, %s233
      %p235 = scmp.eq.s32.totalorder %s31, 0
      %p236 = por %p234, %p235
      %s238 = sadd.s32 %s237, 1
      %p241 = scmp.eq.s32.totalorder %s25, 7
      %p242 = scmp.ne.s32.totalorder %s237, %s239
      %p243 = scmp.eq.s32.totalorder %s25, 0
      %p244 = por %p242, %p243
      %p245 = scmp.ne.s32.totalorder %s237, %s239
      %p246 = scmp.eq.s32.totalorder %s30, 7
      %p247 = por %p245, %p246
      %p248 = scmp.ne.s32.totalorder %s239, %s240
      %p249 = scmp.eq.s32.totalorder %s30, 0
      %p250 = por %p248, %p249
      %p251 = scmp.ne.s32.totalorder %s239, %s240
      %p252 = scmp.eq.s32.totalorder %s31, 7
      %p253 = por %p251, %p252
      %p255 = scmp.ne.s32.totalorder %s240, %s254
      %p256 = scmp.eq.s32.totalorder %s31, 0
      %p257 = por %p255, %p256
      %s259 = sadd.s32 %s258, 1
      %p262 = scmp.eq.s32.totalorder %s25, 7
      %p263 = scmp.ne.s32.totalorder %s258, %s260
      %p264 = scmp.eq.s32.totalorder %s25, 0
      %p265 = por %p263, %p264
      %p266 = scmp.ne.s32.totalorder %s258, %s260
      %p267 = scmp.eq.s32.totalorder %s30, 7
      %p268 = por %p266, %p267
      %p269 = scmp.ne.s32.totalorder %s260, %s261
      %p270 = scmp.eq.s32.totalorder %s30, 0
      %p271 = por %p269, %p270
      %p272 = scmp.ne.s32.totalorder %s260, %s261
      %p273 = scmp.eq.s32.totalorder %s31, 7
      %p274 = por %p272, %p273
      %p276 = scmp.ne.s32.totalorder %s261, %s275
      %p277 = scmp.eq.s32.totalorder %s31, 0
      %p278 = por %p276, %p277
      %s280 = sadd.s32 %s279, 1
      %p283 = scmp.eq.s32.totalorder %s25, 7
      %p284 = scmp.ne.s32.totalorder %s279, %s281
      %p285 = scmp.eq.s32.totalorder %s25, 0
      %p286 = por %p284, %p285
      %p287 = scmp.ne.s32.totalorder %s279, %s281
      %p288 = scmp.eq.s32.totalorder %s30, 7
      %p289 = por %p287, %p288
      %p290 = scmp.ne.s32.totalorder %s281, %s282
      %p291 = scmp.eq.s32.totalorder %s30, 0
      %p292 = por %p290, %p291
      %p293 = scmp.ne.s32.totalorder %s281, %s282
      %p294 = scmp.eq.s32.totalorder %s31, 7
      %p295 = por %p293, %p294
      %p297 = scmp.ne.s32.totalorder %s282, %s296
      %p298 = scmp.eq.s32.totalorder %s31, 0
      %p299 = por %p297, %p298
      %s300 = ssub.s32 %s32, %s51
      %s301 = ssub.s32 %s33, %s47
      %s302 = sor.u32 %s300, %s301
      %p303 = scmp.eq.s32.totalorder %s302, 0
      %s305 = sadd.s32 %s304, 1
      %s306 = scalar_select %p303, %s304, %s305
      %p309 = pneg %p303
      %p310 = scmp.eq.s32.totalorder %s25, 7
      %p311 = por %p309, %p310
      %p312 = scmp.ne.s32.totalorder %s304, %s307
      %p313 = scmp.eq.s32.totalorder %s25, 0
      %p314 = por %p312, %p313
      %p315 = scmp.ne.s32.totalorder %s304, %s307
      %p316 = scmp.eq.s32.totalorder %s30, 7
      %p317 = por %p315, %p316
      %p318 = scmp.ne.s32.totalorder %s307, %s308
      %p319 = scmp.eq.s32.totalorder %s30, 0
      %p320 = por %p318, %p319
      %p321 = scmp.ne.s32.totalorder %s307, %s308
      %p322 = scmp.eq.s32.totalorder %s31, 7
      %p323 = por %p321, %p322
      %p325 = scmp.ne.s32.totalorder %s308, %s324
      %p326 = scmp.eq.s32.totalorder %s31, 0
      %p327 = por %p325, %p326
      %s328 = ssub.s32 %s32, %s51
      %s329 = ssub.s32 %s34, %s43
      %s330 = sor.u32 %s328, %s329
      %s331 = ssub.s32 %s33, %s47
      %s332 = sor.u32 %s330, %s331
      %p333 = scmp.eq.s32.totalorder %s332, 0
      %s335 = sadd.s32 %s334, 1
      %s336 = scalar_select %p333, %s334, %s335
      %p339 = pneg %p333
      %p340 = scmp.eq.s32.totalorder %s25, 7
      %p341 = por %p339, %p340
      %p342 = scmp.ne.s32.totalorder %s334, %s337
      %p343 = scmp.eq.s32.totalorder %s25, 0
      %p344 = por %p342, %p343
      %p345 = scmp.ne.s32.totalorder %s334, %s337
      %p346 = scmp.eq.s32.totalorder %s30, 7
      %p347 = por %p345, %p346
      %p348 = scmp.ne.s32.totalorder %s337, %s338
      %p349 = scmp.eq.s32.totalorder %s30, 0
      %p350 = por %p348, %p349
      %p351 = scmp.ne.s32.totalorder %s337, %s338
      %p352 = scmp.eq.s32.totalorder %s31, 7
      %p353 = por %p351, %p352
      %p355 = scmp.ne.s32.totalorder %s338, %s354
      %p356 = scmp.eq.s32.totalorder %s31, 0
      %p357 = por %p355, %p356
      %p358 = scmp.le.s32.totalorder 1, %s25
      %p359 = scmp.lt.s32.totalorder %s25, 9
      %p360 = pnand %p358, %p359
      %p361 = pneg %p360
      // Predicated region
      $region9: #{attention_layer_forward.1} parent=5 // pred_check
        _
      $region10: #{attention_layer_forward.1} parent=5 // pred_check_branch
        %363 = sbr.rel (%p360) target = $region12
      $region11: #{attention_layer_forward.1} parent=5 // pred_region
        %s364 = ssub.s32 %s25, 1
        // Predicated region
        $region13: #{attention_layer_forward.1} parent=11 // pred_check
          %p365 = pneg %p145
        $region14: #{attention_layer_forward.1} parent=11 // pred_check_branch
          %367 = sbr.rel (%p365) target = $region16
        $region15: #{attention_layer_forward.1} parent=11 // pred_region
          _
        $region16: #{attention_layer_forward.1} parent=11 // pred_fallthru
          _
        // Predicated region
        $region17: #{attention_layer_forward.1} parent=11 // pred_check
          %p368 = pneg %p166
        $region18: #{attention_layer_forward.1} parent=11 // pred_check_branch
          %370 = sbr.rel (%p368) target = $region20
        $region19: #{attention_layer_forward.1} parent=11 // pred_region
          _
        $region20: #{attention_layer_forward.1} parent=11 // pred_fallthru
          _
        // Predicated region
        $region21: #{attention_layer_forward.1} parent=11 // pred_check
          %p371 = pneg %p187
        $region22: #{attention_layer_forward.1} parent=11 // pred_check_branch
          %373 = sbr.rel (%p371) target = $region24
        $region23: #{attention_layer_forward.1} parent=11 // pred_region
          _
        $region24: #{attention_layer_forward.1} parent=11 // pred_fallthru
          _
        // Predicated region
        $region25: #{attention_layer_forward.1} parent=11 // pred_check
          %p374 = pneg %p208
        $region26: #{attention_layer_forward.1} parent=11 // pred_check_branch
          %376 = sbr.rel (%p374) target = $region28
        $region27: #{attention_layer_forward.1} parent=11 // pred_region
          _
        $region28: #{attention_layer_forward.1} parent=11 // pred_fallthru
          _
        // Predicated region
        $region29: #{attention_layer_forward.1} parent=11 // pred_check
          %p377 = pneg %p229
        $region30: #{attention_layer_forward.1} parent=11 // pred_check_branch
          %379 = sbr.rel (%p377) target = $region32
        $region31: #{attention_layer_forward.1} parent=11 // pred_region
          _
        $region32: #{attention_layer_forward.1} parent=11 // pred_fallthru
          _
        // Predicated region
        $region33: #{attention_layer_forward.1} parent=11 // pred_check
          %p380 = pneg %p250
        $region34: #{attention_layer_forward.1} parent=11 // pred_check_branch
          %382 = sbr.rel (%p380) target = $region36
        $region35: #{attention_layer_forward.1} parent=11 // pred_region
          _
        $region36: #{attention_layer_forward.1} parent=11 // pred_fallthru
          _
        // Predicated region
        $region37: #{attention_layer_forward.1} parent=11 // pred_check
          %p383 = pneg %p271
        $region38: #{attention_layer_forward.1} parent=11 // pred_check_branch
          %385 = sbr.rel (%p383) target = $region40
        $region39: #{attention_layer_forward.1} parent=11 // pred_region
          _
        $region40: #{attention_layer_forward.1} parent=11 // pred_fallthru
          _
        // Predicated region
        $region41: #{attention_layer_forward.1} parent=11 // pred_check
          %p386 = pneg %p292
        $region42: #{attention_layer_forward.1} parent=11 // pred_check_branch
          %388 = sbr.rel (%p386) target = $region44
        $region43: #{attention_layer_forward.1} parent=11 // pred_region
          _
        $region44: #{attention_layer_forward.1} parent=11 // pred_fallthru
          _
      $region12: #{attention_layer_forward.1} parent=5 // pred_fallthru
        _
      %p389 = scmp.lt.s32.totalorder %s25, 8
      // Predicated region
      $region45: #{attention_layer_forward.1} parent=5 // pred_check
        %p390 = pneg %p389
      $region46: #{attention_layer_forward.1} parent=5 // pred_check_branch
        %392 = sbr.rel (%p390) target = $region48
      $region47: #{attention_layer_forward.1} parent=5 // pred_region
        // Predicated region
        $region49: #{attention_layer_forward.1} parent=47 // pred_check
          %p393 = pneg %p66
        $region50: #{attention_layer_forward.1} parent=47 // pred_check_branch
          %395 = sbr.rel (%p393) target = $region52
        $region51: #{attention_layer_forward.1} parent=47 // pred_region
          %p396 = scmp.lt.s32.totalorder %s32, 1
          %s397 = scalar_select %p396, %s32, 1
          %p398 = scmp.lt.s32.totalorder %s33, 0
          %s399 = scalar_select %p398, %s33, 0
          %s400 = sadd.s32 %s399, %s397
          %s401 = smul.addr %s400, 8
          %s402 = scalar_lea.vmem %s0, %s401
        $region52: #{attention_layer_forward.1} parent=47 // pred_fallthru
          _
        // Predicated region
        $region53: #{attention_layer_forward.1} parent=47 // pred_check
          %p403 = pneg %p92
        $region54: #{attention_layer_forward.1} parent=47 // pred_check_branch
          %405 = sbr.rel (%p403) target = $region56
        $region55: #{attention_layer_forward.1} parent=47 // pred_region
          %p406 = scmp.lt.s32.totalorder %s32, 1
          %s407 = scalar_select %p406, %s32, 1
          %s408 = smul.addr %s407, 8
          %s409 = scalar_lea.vmem %s1, %s408
        $region56: #{attention_layer_forward.1} parent=47 // pred_fallthru
          _
        // Predicated region
        $region57: #{attention_layer_forward.1} parent=47 // pred_check
          %p410 = pneg %p118
        $region58: #{attention_layer_forward.1} parent=47 // pred_check_branch
          %412 = sbr.rel (%p410) target = $region60
        $region59: #{attention_layer_forward.1} parent=47 // pred_region
          %p413 = scmp.lt.s32.totalorder %s32, 1
          %s414 = scalar_select %p413, %s32, 1
          %s415 = smul.addr %s414, 8
          %s416 = scalar_lea.vmem %s2, %s415
        $region60: #{attention_layer_forward.1} parent=47 // pred_fallthru
          _
      $region48: #{attention_layer_forward.1} parent=5 // pred_fallthru
        _
      %p417 = scmp.le.s32.totalorder 1, %s25
      %p418 = scmp.lt.s32.totalorder %s25, 9
      %p419 = pnand %p417, %p418
      %p420 = pneg %p419
      // Predicated region
      $region61: #{attention_layer_forward.1} parent=5 // pred_check
        _
      $region62: #{attention_layer_forward.1} parent=5 // pred_check_branch
        %422 = sbr.rel (%p419) target = $region64
      $region63: #{attention_layer_forward.1} parent=5 // pred_region
        %s423 = ssub.s32 %s25, 1
        %p424 = scmp.lt.s32.totalorder %s35, 1
        %s425 = scalar_select %p424, %s35, 1
        %p426 = scmp.lt.s32.totalorder %s36, 0
        %s427 = scalar_select %p426, %s36, 0
        %s428 = sadd.s32 %s427, %s425
        %s429 = smul.addr %s428, 8
        %s430 = scalar_lea.vmem %s0, %s429
        %p431 = pneg %p72
        %p432 = pneg %p69
        %p433 = scmp.lt.s32.totalorder %s35, 1
        %s434 = scalar_select %p433, %s35, 1
        %s435 = smul.addr %s434, 8
        %s436 = scalar_lea.vmem %s1, %s435
        %p437 = pneg %p98
        %p438 = pneg %p95
        %p439 = scmp.lt.s32.totalorder %s35, 1
        %s440 = scalar_select %p439, %s35, 1
        %s441 = smul.addr %s440, 8
        %s442 = scalar_lea.vmem %s2, %s441
        %p443 = pneg %p124
        %p444 = pneg %p121
        %p445 = pneg %p145
        %p446 = pneg %p142
        %p447 = pneg %p166
        %p448 = pneg %p163
        %p449 = pneg %p187
        %p450 = pneg %p184
        %p451 = pneg %p208
        %p452 = pneg %p205
        %p453 = pneg %p229
        %p454 = pneg %p226
        %p455 = pneg %p250
        %p456 = pneg %p247
        %p457 = pneg %p271
        %p458 = pneg %p268
        %p459 = pneg %p292
        %p460 = pneg %p289
        %p461 = pneg %p320
        %p462 = pneg %p317
        %s463 = sand.u32 %s307, 1
        %s464 = scalar_lea.sflag [#allocation6], %s463
        %s465 = sand.u32 %s307, 1
        %s466 = smul.addr %s465, 8
        %s467 = scalar_lea.vmem [#allocation5], %s466
        %p468 = pneg %p350
        %p469 = pneg %p347
        %s470 = sand.u32 %s337, 1
        %s471 = scalar_lea.sflag [#allocation8], %s470
        %s472 = sand.u32 %s337, 1
        %s473 = smul.addr %s472, 4
        %s474 = scalar_lea.vmem [#allocation7], %s473
        %p475 = scmp.lt.s32.totalorder %s35, 1
        %s476 = scalar_select %p475, %s35, 1
        %p477 = scmp.lt.s32.totalorder %s36, 0
        %s478 = scalar_select %p477, %s36, 0
        %s479 = sadd.s32 %s478, %s476
        %s480 = smul.addr %s479, 8
        %s481 = scalar_lea.vmem %s0, %s480
        %p482 = scmp.lt.s32.totalorder %s35, 1
        %s483 = scalar_select %p482, %s35, 1
        %s484 = smul.addr %s483, 8
        %s485 = scalar_lea.vmem %s1, %s484
        %p486 = scmp.lt.s32.totalorder %s35, 1
        %s487 = scalar_select %p486, %s35, 1
        %s488 = smul.addr %s487, 8
        %s489 = scalar_lea.vmem %s2, %s488
        %p491 = scmp.eq.s32.totalorder %s36, 0
        // Predicated region
        $region65: #{attention_layer_forward.1} parent=63 // pred_check
          %p492 = pneg %p491
        $region66: #{attention_layer_forward.1} parent=63 // pred_check_branch
          %494 = sbr.rel (%p492) target = $region68
        $region67: #{attention_layer_forward.1} parent=63 // pred_region
          %v495 = vld [vmem:[%s485] sm:$0xff]
          %v496 = vpack.c.bf16 %v495, %v495
          %v497 = vld [vmem:[%s489] sm:$0xff]
          %v498 = vpack.c.bf16 %v497, %v497
          %s499 = smul.u32 %s37, 4
          %s500 = smul.addr %s499, 4
          %s501 = scalar_lea.vmem %s5, %s500
          %v502 = vld [vmem:[%s501] sm:$0xf]
          %v503 = vld [vmem:[%s501 + $0x4] sm:$0xf]
          %v504 = vld [vmem:[%s501 + $0x8] sm:$0xf]
          %v505 = vld [vmem:[%s501 + $0xc] sm:$0xf]
          %s506 = scalar_lea.vmem %s6, %s37
          %v507 = vld [vmem:[%s506] sm:$0x1]
          %v509 = vlaneseq
          %v510 = vshrl.u32 %v509, 7
          %v511 = vsub.s32 0, %v510
          %v512 = vrot.slane %v507, %v511
          %v518 = vunpack.c.l.b16 %v502
          %v519 = vunpack.c.l.b16 %v503
          %v520 = vunpack.c.l.b16 %v504
          %v521 = vunpack.c.l.b16 %v505
          %v522 = vpack.c.b16 %v519, %v518
          %v523 = vpack.c.b16 %v521, %v520
          %vm526 = vcmask 261120
          %v528 = vsel %vm526, %v496, 0
          %530 = vmatprep.subr.bf16.mxu0 0
          %531 = vmatpush1.bf16.msra.mxu0 %v522
          %532 = vmatprep.subr.bf16.mxu0 0
          %533 = vmatpush1.bf16.msra.mxu0 %v523
          %534 = vmatprep.subr.bf16.mxu0 0
          %535 = vmatpush1.bf16.msra.mxu0 0
          %536 = vmatprep.subr.bf16.mxu0 0
          %537 = vmatpush1.bf16.msra.mxu0 0
          %538 = vmatprep.subr.bf16.mxu0 0
          %539 = vmatpush1.bf16.msra.mxu0 0
          %540 = vmatprep.subr.bf16.mxu0 0
          %541 = vmatpush1.bf16.msra.mxu0 0
          %542 = vmatprep.subr.bf16.mxu0 0
          %543 = vmatpush1.bf16.msra.mxu0 0
          %544 = vmatprep.subr.bf16.mxu0 0
          %545 = vmatpush1.bf16.msra.mxu0 0
          %546 = vmatprep.subr.bf16.mxu0 0
          %547 = vmatpush1.bf16.msra.mxu0 0
          %548 = vmatprep.subr.bf16.mxu0 0
          %549 = vmatpush1.bf16.msra.mxu0 0
          %550 = vmatprep.subr.bf16.mxu0 0
          %551 = vmatpush1.bf16.msra.mxu0 0
          %552 = vmatprep.subr.bf16.mxu0 0
          %553 = vmatpush1.bf16.msra.mxu0 0
          %554 = vmatprep.subr.bf16.mxu0 0
          %555 = vmatpush1.bf16.msra.mxu0 0
          %556 = vmatprep.subr.bf16.mxu0 0
          %557 = vmatpush1.bf16.msra.mxu0 0
          %558 = vmatprep.subr.bf16.mxu0 0
          %559 = vmatpush1.bf16.msra.mxu0 0
          %560 = vmatprep.subr.bf16.mxu0 0
          %561 = vmatpush1.bf16.msra.mxu0 0
          %562 = vmatprep.mubr.bf16.mxu0 0
          %563 = vmatmul.mubr.bf16.gmra.mrb[0].mxu0 %v528
          %v564 = vpop.f32.mrb[0].mxu0
          %v565 = vadd.f32 %v512, %v564
          %v566 = vpop.f32.mrb[0].mxu0
          %v567 = vpop.f32.mrb[0].mxu0
          %v568 = vpop.f32.mrb[0].mxu0
          %569 = vdwg.mxu0
          %v570 = vpack.c.bf16 %v565, %v565
          %s571 = smul.addr %s37, 4
          %s572 = scalar_lea.vmem [#allocation2], %s571
          %vm573 = vcmask 60416
          %574 = vst.msk [vmem:[%s572] sm:$0xf] %vm573, %v570
          %s575 = smul.addr %s499, 4
          %s576 = scalar_lea.vmem %s7, %s575
          %v577 = vld [vmem:[%s576] sm:$0xf]
          %v578 = vld [vmem:[%s576 + $0x4] sm:$0xf]
          %v579 = vld [vmem:[%s576 + $0x8] sm:$0xf]
          %v580 = vld [vmem:[%s576 + $0xc] sm:$0xf]
          %s581 = scalar_lea.vmem %s8, %s37
          %v582 = vld [vmem:[%s581] sm:$0x1]
          %v584 = vlaneseq
          %v585 = vshrl.u32 %v584, 7
          %v586 = vsub.s32 0, %v585
          %v587 = vrot.slane %v582, %v586
          %v593 = vunpack.c.l.b16 %v577
          %v594 = vunpack.c.l.b16 %v578
          %v595 = vunpack.c.l.b16 %v579
          %v596 = vunpack.c.l.b16 %v580
          %v597 = vpack.c.b16 %v594, %v593
          %v598 = vpack.c.b16 %v596, %v595
          %v602 = vsel %vm526, %v498, 0
          %604 = vmatprep.subr.bf16.mxu0 0
          %605 = vmatpush1.bf16.msra.mxu0 %v597
          %606 = vmatprep.subr.bf16.mxu0 0
          %607 = vmatpush1.bf16.msra.mxu0 %v598
          %608 = vmatprep.subr.bf16.mxu0 0
          %609 = vmatpush1.bf16.msra.mxu0 0
          %610 = vmatprep.subr.bf16.mxu0 0
          %611 = vmatpush1.bf16.msra.mxu0 0
          %612 = vmatprep.subr.bf16.mxu0 0
          %613 = vmatpush1.bf16.msra.mxu0 0
          %614 = vmatprep.subr.bf16.mxu0 0
          %615 = vmatpush1.bf16.msra.mxu0 0
          %616 = vmatprep.subr.bf16.mxu0 0
          %617 = vmatpush1.bf16.msra.mxu0 0
          %618 = vmatprep.subr.bf16.mxu0 0
          %619 = vmatpush1.bf16.msra.mxu0 0
          %620 = vmatprep.subr.bf16.mxu0 0
          %621 = vmatpush1.bf16.msra.mxu0 0
          %622 = vmatprep.subr.bf16.mxu0 0
          %623 = vmatpush1.bf16.msra.mxu0 0
          %624 = vmatprep.subr.bf16.mxu0 0
          %625 = vmatpush1.bf16.msra.mxu0 0
          %626 = vmatprep.subr.bf16.mxu0 0
          %627 = vmatpush1.bf16.msra.mxu0 0
          %628 = vmatprep.subr.bf16.mxu0 0
          %629 = vmatpush1.bf16.msra.mxu0 0
          %630 = vmatprep.subr.bf16.mxu0 0
          %631 = vmatpush1.bf16.msra.mxu0 0
          %632 = vmatprep.subr.bf16.mxu0 0
          %633 = vmatpush1.bf16.msra.mxu0 0
          %634 = vmatprep.subr.bf16.mxu0 0
          %635 = vmatpush1.bf16.msra.mxu0 0
          %636 = vmatprep.mubr.bf16.mxu0 0
          %637 = vmatmul.mubr.bf16.gmra.mrb[0].mxu0 %v602
          %v638 = vpop.f32.mrb[0].mxu0
          %v639 = vadd.f32 %v587, %v638
          %v640 = vpop.f32.mrb[0].mxu0
          %v641 = vpop.f32.mrb[0].mxu0
          %v642 = vpop.f32.mrb[0].mxu0
          %643 = vdwg.mxu0
          %v644 = vpack.c.bf16 %v639, %v639
          %s645 = smul.addr %s37, 4
          %s646 = scalar_lea.vmem [#allocation3], %s645
          %647 = vst.msk [vmem:[%s646] sm:$0xf] %vm573, %v644
        $region68: #{attention_layer_forward.1} parent=63 // pred_fallthru
          _
        %v648 = vld [vmem:[%s481] sm:$0xff]
        %v649 = vpack.c.bf16 %v648, %v648
        %s650 = smul.u32 %s37, 4
        %s651 = smul.addr %s650, 4
        %s652 = scalar_lea.vmem %s3, %s651
        %v653 = vld [vmem:[%s652] sm:$0xf]
        %v654 = vld [vmem:[%s652 + $0x4] sm:$0xf]
        %v655 = vld [vmem:[%s652 + $0x8] sm:$0xf]
        %v656 = vld [vmem:[%s652 + $0xc] sm:$0xf]
        %s657 = scalar_lea.vmem %s4, %s37
        %v658 = vld [vmem:[%s657] sm:$0x1]
        %v660 = vlaneseq
        %v661 = vshrl.u32 %v660, 7
        %v662 = vsub.s32 0, %v661
        %v663 = vrot.slane %v658, %v662
        %v669 = vunpack.c.l.b16 %v653
        %v670 = vunpack.c.l.b16 %v654
        %v671 = vunpack.c.l.b16 %v655
        %v672 = vunpack.c.l.b16 %v656
        %v673 = vpack.c.b16 %v670, %v669
        %v674 = vpack.c.b16 %v672, %v671
        %vm677 = vcmask 261120
        %v679 = vsel %vm677, %v649, 0
        %681 = vmatprep.subr.bf16.mxu0 0
        %682 = vmatpush1.bf16.msra.mxu0 %v673
        %683 = vmatprep.subr.bf16.mxu0 0
        %684 = vmatpush1.bf16.msra.mxu0 %v674
        %685 = vmatprep.subr.bf16.mxu0 0
        %686 = vmatpush1.bf16.msra.mxu0 0
        %687 = vmatprep.subr.bf16.mxu0 0
        %688 = vmatpush1.bf16.msra.mxu0 0
        %689 = vmatprep.subr.bf16.mxu0 0
        %690 = vmatpush1.bf16.msra.mxu0 0
        %691 = vmatprep.subr.bf16.mxu0 0
        %692 = vmatpush1.bf16.msra.mxu0 0
        %693 = vmatprep.subr.bf16.mxu0 0
        %694 = vmatpush1.bf16.msra.mxu0 0
        %695 = vmatprep.subr.bf16.mxu0 0
        %696 = vmatpush1.bf16.msra.mxu0 0
        %697 = vmatprep.subr.bf16.mxu0 0
        %698 = vmatpush1.bf16.msra.mxu0 0
        %699 = vmatprep.subr.bf16.mxu0 0
        %700 = vmatpush1.bf16.msra.mxu0 0
        %701 = vmatprep.subr.bf16.mxu0 0
        %702 = vmatpush1.bf16.msra.mxu0 0
        %703 = vmatprep.subr.bf16.mxu0 0
        %704 = vmatpush1.bf16.msra.mxu0 0
        %705 = vmatprep.subr.bf16.mxu0 0
        %706 = vmatpush1.bf16.msra.mxu0 0
        %707 = vmatprep.subr.bf16.mxu0 0
        %708 = vmatpush1.bf16.msra.mxu0 0
        %709 = vmatprep.subr.bf16.mxu0 0
        %710 = vmatpush1.bf16.msra.mxu0 0
        %711 = vmatprep.subr.bf16.mxu0 0
        %712 = vmatpush1.bf16.msra.mxu0 0
        %713 = vmatprep.mubr.bf16.mxu0 0
        %714 = vmatmul.mubr.bf16.gmra.mrb[0].mxu0 %v679
        %v715 = vpop.f32.mrb[0].mxu0
        %v716 = vadd.f32 %v663, %v715
        %v717 = vpop.f32.mrb[0].mxu0
        %v718 = vpop.f32.mrb[0].mxu0
        %v719 = vpop.f32.mrb[0].mxu0
        %720 = vdwg.mxu0
        %v721 = vpack.c.bf16 %v716, %v716
        %s722 = smul.addr %s37, 4
        %s723 = scalar_lea.vmem [#allocation2], %s722
        %v724 = vld [vmem:[%s723] sm:$0xf]
        %s725 = smul.addr %s37, 4
        %s726 = scalar_lea.vmem [#allocation3], %s725
        %v727 = vld [vmem:[%s726] sm:$0xf]
        %vm728 = vcmask 64512
        %v730 = vsel %vm728, %v721, 0
        %v733 = vsel %vm728, %v724, 0
        %735 = vmatprep.subr.bf16.mxu0 0
        %736 = vmatpush1.bf16.xpose.msra.mxu0 %v733
        %737 = vmatprep.subr.bf16.mxu0 0
        %738 = vmatpush1.bf16.xpose.msra.mxu0 0
        %739 = vmatprep.subr.bf16.mxu0 0
        %740 = vmatpush1.bf16.xpose.msra.mxu0 0
        %741 = vmatprep.subr.bf16.mxu0 0
        %742 = vmatpush1.bf16.xpose.msra.mxu0 0
        %743 = vmatprep.subr.bf16.mxu0 0
        %744 = vmatpush1.bf16.xpose.msra.mxu0 0
        %745 = vmatprep.subr.bf16.mxu0 0
        %746 = vmatpush1.bf16.xpose.msra.mxu0 0
        %747 = vmatprep.subr.bf16.mxu0 0
        %748 = vmatpush1.bf16.xpose.msra.mxu0 0
        %749 = vmatprep.subr.bf16.mxu0 0
        %750 = vmatpush1.bf16.xpose.msra.mxu0 0
        %751 = vmatprep.subr.bf16.mxu0 0
        %752 = vmatpush1.bf16.xpose.msra.mxu0 0
        %753 = vmatprep.subr.bf16.mxu0 0
        %754 = vmatpush1.bf16.xpose.msra.mxu0 0
        %755 = vmatprep.subr.bf16.mxu0 0
        %756 = vmatpush1.bf16.xpose.msra.mxu0 0
        %757 = vmatprep.subr.bf16.mxu0 0
        %758 = vmatpush1.bf16.xpose.msra.mxu0 0
        %759 = vmatprep.subr.bf16.mxu0 0
        %760 = vmatpush1.bf16.xpose.msra.mxu0 0
        %761 = vmatprep.subr.bf16.mxu0 0
        %762 = vmatpush1.bf16.xpose.msra.mxu0 0
        %763 = vmatprep.subr.bf16.mxu0 0
        %764 = vmatpush1.bf16.xpose.msra.mxu0 0
        %765 = vmatprep.subr.bf16.mxu0 0
        %766 = vmatpush1.bf16.xpose.msra.mxu0 0
        %767 = vmatprep.mubr.bf16.mxu0 0
        %768 = vmatmul.mubr.bf16.gmra.mrb[0].mxu0 %v730
        %v769 = vpop.f32.mrb[0].mxu0
        %v770 = vadd.f32 0.0, %v769
        %v771 = vpop.f32.mrb[0].mxu0
        %v772 = vpop.f32.mrb[0].mxu0
        %v773 = vpop.f32.mrb[0].mxu0
        %774 = vdwg.mxu0
        %v775 = vsel %vm728, %v770, -inf
        %776 = vmax.xlane.f32.xlu0 %v775
        %v777 = vpop.xlane.xlu0 %776
        %v778 = vsub.f32 %v770, %v777
        %v779 = vmul.f32 %v778, 1.442695
        %v780 = vpow.pop %v779
        %v781 = vsel %vm728, %v780, 0.0
        %782 = vadd.xlane.f32.xlu0 %v781
        %v783 = vpop.xlane.xlu0 %782
        %v784 = vrcp.pop %v783
        %v785 = vmul.f32 %v780, %v784
        %v786 = vpack.c.bf16 %v785, %v785
        %vm787 = vcmask 60416
        %788 = vst.msk [vmem:[%s474] sm:$0xf] %vm787, %v786
        %v790 = vsel %vm728, %v786, 0
        %vm792 = vcmask 1043456
        %v794 = vsel %vm792, %v727, 0
        %796 = vmatprep.subr.bf16.mxu0 0
        %797 = vmatpush1.bf16.msra.mxu0 %v794
        %798 = vmatprep.subr.bf16.mxu0 0
        %799 = vmatpush1.bf16.msra.mxu0 0
        %800 = vmatprep.subr.bf16.mxu0 0
        %801 = vmatpush1.bf16.msra.mxu0 0
        %802 = vmatprep.subr.bf16.mxu0 0
        %803 = vmatpush1.bf16.msra.mxu0 0
        %804 = vmatprep.subr.bf16.mxu0 0
        %805 = vmatpush1.bf16.msra.mxu0 0
        %806 = vmatprep.subr.bf16.mxu0 0
        %807 = vmatpush1.bf16.msra.mxu0 0
        %808 = vmatprep.subr.bf16.mxu0 0
        %809 = vmatpush1.bf16.msra.mxu0 0
        %810 = vmatprep.subr.bf16.mxu0 0
        %811 = vmatpush1.bf16.msra.mxu0 0
        %812 = vmatprep.subr.bf16.mxu0 0
        %813 = vmatpush1.bf16.msra.mxu0 0
        %814 = vmatprep.subr.bf16.mxu0 0
        %815 = vmatpush1.bf16.msra.mxu0 0
        %816 = vmatprep.subr.bf16.mxu0 0
        %817 = vmatpush1.bf16.msra.mxu0 0
        %818 = vmatprep.subr.bf16.mxu0 0
        %819 = vmatpush1.bf16.msra.mxu0 0
        %820 = vmatprep.subr.bf16.mxu0 0
        %821 = vmatpush1.bf16.msra.mxu0 0
        %822 = vmatprep.subr.bf16.mxu0 0
        %823 = vmatpush1.bf16.msra.mxu0 0
        %824 = vmatprep.subr.bf16.mxu0 0
        %825 = vmatpush1.bf16.msra.mxu0 0
        %826 = vmatprep.subr.bf16.mxu0 0
        %827 = vmatpush1.bf16.msra.mxu0 0
        %828 = vmatprep.mubr.bf16.mxu0 0
        %829 = vmatmul.mubr.bf16.gmra.mrb[0].mxu0 %v790
        %v830 = vpop.f32.mrb[0].mxu0
        %v831 = vadd.f32 0.0, %v830
        %v832 = vpop.f32.mrb[0].mxu0
        %v833 = vpop.f32.mrb[0].mxu0
        %v834 = vpop.f32.mrb[0].mxu0
        %835 = vdwg.mxu0
        %p836 = scmp.eq.s32.totalorder %s37, 0
        // Predicated region
        $region69: #{attention_layer_forward.1} parent=63 // pred_check
          %p837 = pneg %p836
        $region70: #{attention_layer_forward.1} parent=63 // pred_check_branch
          %839 = sbr.rel (%p837) target = $region72
        $region71: #{attention_layer_forward.1} parent=63 // pred_region
          %840 = vst.msk [vmem:[#allocation4] sm:$0xff] %vm677, 0.0
        $region72: #{attention_layer_forward.1} parent=63 // pred_fallthru
          _
        %v841 = vld [vmem:[#allocation4] sm:$0xff]
        %v842 = vpack.c.bf16 %v831, %v831
        %s843 = smul.addr %s37, 4
        %s844 = scalar_lea.vmem %s9, %s843
        %v845 = vld [vmem:[%s844] sm:$0xf]
        %v847 = vsel %vm728, %v842, 0
        %v850 = vsel %vm792, %v845, 0
        %852 = vmatprep.subr.bf16.mxu0 0
        %853 = vmatpush1.bf16.msra.mxu0 %v850
        %854 = vmatprep.subr.bf16.mxu0 0
        %855 = vmatpush1.bf16.msra.mxu0 0
        %856 = vmatprep.subr.bf16.mxu0 0
        %857 = vmatpush1.bf16.msra.mxu0 0
        %858 = vmatprep.subr.bf16.mxu0 0
        %859 = vmatpush1.bf16.msra.mxu0 0
        %860 = vmatprep.subr.bf16.mxu0 0
        %861 = vmatpush1.bf16.msra.mxu0 0
        %862 = vmatprep.subr.bf16.mxu0 0
        %863 = vmatpush1.bf16.msra.mxu0 0
        %864 = vmatprep.subr.bf16.mxu0 0
        %865 = vmatpush1.bf16.msra.mxu0 0
        %866 = vmatprep.subr.bf16.mxu0 0
        %867 = vmatpush1.bf16.msra.mxu0 0
        %868 = vmatprep.subr.bf16.mxu0 0
        %869 = vmatpush1.bf16.msra.mxu0 0
        %870 = vmatprep.subr.bf16.mxu0 0
        %871 = vmatpush1.bf16.msra.mxu0 0
        %872 = vmatprep.subr.bf16.mxu0 0
        %873 = vmatpush1.bf16.msra.mxu0 0
        %874 = vmatprep.subr.bf16.mxu0 0
        %875 = vmatpush1.bf16.msra.mxu0 0
        %876 = vmatprep.subr.bf16.mxu0 0
        %877 = vmatpush1.bf16.msra.mxu0 0
        %878 = vmatprep.subr.bf16.mxu0 0
        %879 = vmatpush1.bf16.msra.mxu0 0
        %880 = vmatprep.subr.bf16.mxu0 0
        %881 = vmatpush1.bf16.msra.mxu0 0
        %882 = vmatprep.subr.bf16.mxu0 0
        %883 = vmatpush1.bf16.msra.mxu0 0
        %884 = vmatprep.mubr.bf16.mxu0 0
        %885 = vmatmul.mubr.bf16.gmra.mrb[0].mxu0 %v847
        %v886 = vpop.f32.mrb[0].mxu0
        %v887 = vadd.f32 0.0, %v886
        %v888 = vpop.f32.mrb[0].mxu0
        %v889 = vpop.f32.mrb[0].mxu0
        %v890 = vpop.f32.mrb[0].mxu0
        %891 = vdwg.mxu0
        %v892 = vadd.f32 %v841, %v887
        %893 = vst.msk [vmem:[#allocation4] sm:$0xff] %vm677, %v892
        %p894 = scmp.eq.s32.totalorder %s37, 3
        // Predicated region
        $region73: #{attention_layer_forward.1} parent=63 // pred_check
          %p895 = pneg %p894
        $region74: #{attention_layer_forward.1} parent=63 // pred_check_branch
          %897 = sbr.rel (%p895) target = $region76
        $region75: #{attention_layer_forward.1} parent=63 // pred_region
          %v898 = vld [vmem:[#allocation4] sm:$0xff]
          %v899 = vld [vmem:[%s10] sm:$0x1]
          %v901 = vlaneseq
          %v902 = vshrl.u32 %v901, 7
          %v903 = vsub.s32 0, %v902
          %v904 = vrot.slane %v899, %v903
          %v906 = vadd.f32 %v898, %v904
          %907 = vst.msk [vmem:[%s467] sm:$0xff] %vm677, %v906
        $region76: #{attention_layer_forward.1} parent=63 // pred_fallthru
          _
        %s908 = sand.u32 %s307, 1
        %s909 = scalar_lea.sflag [#allocation6], %s908
        %s910 = sand.u32 %s307, 1
        %s911 = smul.addr %s910, 8
        %s912 = scalar_lea.vmem [#allocation5], %s911
        %s913 = sand.u32 %s337, 1
        %s914 = scalar_lea.sflag [#allocation8], %s913
        %s915 = sand.u32 %s337, 1
        %s916 = smul.addr %s915, 4
        %s917 = scalar_lea.vmem [#allocation7], %s916
        // Predicated region
        $region77: #{attention_layer_forward.1} parent=63 // pred_check
          %p918 = pneg %p317
        $region78: #{attention_layer_forward.1} parent=63 // pred_check_branch
          %920 = sbr.rel (%p918) target = $region80
        $region79: #{attention_layer_forward.1} parent=63 // pred_region
          %s922 = ssub.s32 128, 128
          %923 = vsyncadd %s909, %s922
          %s924 = sadd.s32 %s36, %s35
          %s925 = smul.addr %s924, 128
          %s926 = scalar_lea.hbm %s11, %s925
          %s928 = sshll.u32 %s912, 4
          %s929 = int_to_ptr.vmem [resolvable:$true] %s928
          %931 = dma.vmem_to_hbm [thread:$0]  %s929, 128, %s926, %s909
        $region80: #{attention_layer_forward.1} parent=63 // pred_fallthru
          _
        // Predicated region
        $region81: #{attention_layer_forward.1} parent=63 // pred_check
          %p932 = pneg %p347
        $region82: #{attention_layer_forward.1} parent=63 // pred_check_branch
          %934 = sbr.rel (%p932) target = $region84
        $region83: #{attention_layer_forward.1} parent=63 // pred_region
          %s936 = ssub.s32 64, 64
          %937 = vsyncadd %s914, %s936
          %s938 = sadd.s32 %s36, %s37
          %s939 = smul.addr %s35, 4
          %s940 = sadd.s32 %s938, %s939
          %s941 = smul.addr %s940, 64
          %s942 = scalar_lea.hbm %s12, %s941
          %s944 = sshll.u32 %s917, 4
          %s945 = int_to_ptr.vmem [resolvable:$true] %s944
          %947 = dma.vmem_to_hbm [thread:$0]  %s945, 64, %s942, %s914
        $region84: #{attention_layer_forward.1} parent=63 // pred_fallthru
          _
      $region64: #{attention_layer_forward.1} parent=5 // pred_fallthru
        _
      %p948 = scmp.le.s32.totalorder 2, %s25
      // Predicated region
      $region85: #{attention_layer_forward.1} parent=5 // pred_check
        %p949 = pneg %p948
      $region86: #{attention_layer_forward.1} parent=5 // pred_check_branch
        %951 = sbr.rel (%p949) target = $region88
      $region87: #{attention_layer_forward.1} parent=5 // pred_region
        %s952 = ssub.s32 %s25, 2
        // Predicated region
        $region89: #{attention_layer_forward.1} parent=87 // pred_check
          %p953 = pneg %p323
        $region90: #{attention_layer_forward.1} parent=87 // pred_check_branch
          %955 = sbr.rel (%p953) target = $region92
        $region91: #{attention_layer_forward.1} parent=87 // pred_region
          %s956 = sand.u32 %s308, 1
          %s957 = scalar_lea.sflag [#allocation6], %s956
          %s958 = sand.u32 %s308, 1
          %s959 = smul.addr %s958, 8
          %s960 = scalar_lea.vmem [#allocation5], %s959
          %961 = dma.done %s957, 128
        $region92: #{attention_layer_forward.1} parent=87 // pred_fallthru
          _
        // Predicated region
        $region93: #{attention_layer_forward.1} parent=87 // pred_check
          %p962 = pneg %p353
        $region94: #{attention_layer_forward.1} parent=87 // pred_check_branch
          %964 = sbr.rel (%p962) target = $region96
        $region95: #{attention_layer_forward.1} parent=87 // pred_region
          %s965 = sand.u32 %s338, 1
          %s966 = scalar_lea.sflag [#allocation8], %s965
          %s967 = sand.u32 %s338, 1
          %s968 = smul.addr %s967, 4
          %s969 = scalar_lea.vmem [#allocation7], %s968
          %970 = dma.done %s966, 64
        $region96: #{attention_layer_forward.1} parent=87 // pred_fallthru
          _
      $region88: #{attention_layer_forward.1} parent=5 // pred_fallthru
        _
    $region6: #{attention_layer_forward.1} parent=1 // loop_footer
      %s29 = sadd.s32 1, %s25
    $region7: #{attention_layer_forward.1} parent=1 // loop_footer_branch
      %24 = sbr.rel target = $region3
    $region8: #{attention_layer_forward.1} parent=1 // loop_exit
      _
    %971 = vsyncpa [#allocation6], 1
    %s972 = scalar_lea.sflag [#allocation6], 1
    %973 = vsyncpa %s972, 1
    %974 = vsyncpa [#allocation8], 1
    %s975 = scalar_lea.sflag [#allocation8], 1
    %976 = vsyncpa %s975, 1

</llo_original>
